<compile_context>
chip_gen: v5e
topology: v5e:2x2
jax: 0.10.0
libtpu: 0.0.40
codegen_flags: <defaults>
</compile_context>

<pallas_src>
import functools

import jax
import jax.numpy as jnp
from jax.experimental import pallas as pl
from jax.experimental.pallas import tpu as pltpu


def _round_up(x, m):
    return (x + m - 1) // m * m


def _pick_tile(requested, total, granule=128):
    """Largest multiple of `granule` <= requested that divides `total`.

    `total` must itself be a multiple of `granule`.
    """
    t = max(granule, min(requested, total) // granule * granule)
    while total % t:
        t -= granule
    return t


# --------------------------------------------------------------------------
# Kernel 1: support = tanh?(features @ W^T), written lane-dense (f_pad cols)
# --------------------------------------------------------------------------
def _support_kernel(feat_ref, w_ref, sup_ref, *, active):
    s = jnp.dot(feat_ref[...], w_ref[...], preferred_element_type=jnp.float32)
    if active:
        s = jnp.tanh(s)
    sup_ref[...] = s.astype(sup_ref.dtype)


def _compute_support(feat_p, w_t_pad, *, active, out_dtype, tm):
    n_pad, f_in_pad = feat_p.shape
    f_pad = w_t_pad.shape[1]
    flops = 2 * n_pad * f_in_pad * f_pad
    bytes_accessed = (
        feat_p.size * feat_p.dtype.itemsize
        + w_t_pad.size * w_t_pad.dtype.itemsize
        + n_pad * f_pad * jnp.dtype(out_dtype).itemsize
    )
    return pl.pallas_call(
        functools.partial(_support_kernel, active=active),
        out_shape=jax.ShapeDtypeStruct((n_pad, f_pad), out_dtype),
        grid_spec=pltpu.PrefetchScalarGridSpec(
            num_scalar_prefetch=0,
            grid=(n_pad // tm,),
            in_specs=[
                pl.BlockSpec((tm, f_in_pad), lambda i: (i, 0)),      # features
                pl.BlockSpec((f_in_pad, f_pad), lambda i: (0, 0)),   # W^T (const)
            ],
            out_specs=pl.BlockSpec((tm, f_pad), lambda i: (i, 0)),
        ),
        compiler_params=pltpu.CompilerParams(
            dimension_semantics=("parallel",),
        ),
        cost_estimate=pl.CostEstimate(
            flops=flops,
            transcendentals=(n_pad * f_pad) if active else 0,
            bytes_accessed=bytes_accessed,
        ),
    )(feat_p, w_t_pad)


# --------------------------------------------------------------------------
# Kernel 2: output = adj @ support, (row, K) grid, accumulate into out_ref
# --------------------------------------------------------------------------
def _aggregate_kernel(adj_ref, sup_ref, out_ref, *, tk, mxu_dtype, sup_resident):
    k = pl.program_id(1)

    @pl.when(k == 0)
    def _():
        out_ref[...] = jnp.zeros_like(out_ref)   # f32 block, resident across K

    adj_t = adj_ref[...]
    if mxu_dtype is not None:
        # adj stays f32 in HBM; per-tile cast on the VPU (free when mem-bound).
        adj_t = adj_t.astype(mxu_dtype)

    if sup_resident:
        start = pl.multiple_of(k * tk, tk)
        sup_t = sup_ref[pl.ds(start, tk), :]      # whole support is VMEM-resident
    else:
        sup_t = sup_ref[...]

    out_ref[...] += jnp.dot(adj_t, sup_t, preferred_element_type=jnp.float32)


def gnn_layer(features, adj, weight, *, active=False,
              compute_dtype=jnp.float32, tm=512, tk=1024,
              support_resident_bytes=4 * 1024 * 1024):
    """features: [N, Fin], adj: [N, N], weight: [Fout, Fin].

    Returns adj @ tanh?(features @ W^T) as [N, Fout] in features.dtype.
    `compute_dtype` controls MXU input precision of the dominant adj@support
    matmul (accumulation is always f32).  Default f32 matches the PyTorch
    reference; pass jnp.bfloat16 to opt into the faster quantized path.
    """
    n, f_in = features.shape
    f_out, f_in_w = weight.shape
    assert f_in_w == f_in
    assert adj.shape == (n, n)

    compute_dtype = jnp.dtype(compute_dtype)
    out_dtype = jnp.dtype(features.dtype)

    # Lane-dense widths and 128-aligned row count.
    f_pad = max(128, _round_up(f_out, 128))
    f_in_pad = max(128, _round_up(f_in, 128))
    n_pad = _round_up(n, 128)

    # XLA-side padding of the SMALL arrays only (O(N*Fin), O(Fin*Fout)).
    w_t_pad = jnp.zeros((f_in_pad, f_pad), jnp.float32)
    w_t_pad = w_t_pad.at[:f_in, :f_out].set(weight.astype(jnp.float32).T)
    feat_p = features.astype(jnp.float32)
    if (n_pad, f_in_pad) != (n, f_in):
        feat_p = jnp.pad(feat_p, ((0, n_pad - n), (0, f_in_pad - f_in)))

    adj_p = adj  # no copy / no dtype cast: adj is read straight from HBM as f32
    if n_pad != n:
        # TODO(synk): mask the last K tile in-kernel instead of this O(N^2) pad
        # copy when N is not 128-aligned (zeros are required so garbage never
        # multiplies through the MXU).
        adj_p = jnp.pad(adj, ((0, n_pad - n), (0, n_pad - n)))

    # Tile selection (multiples of 128 that divide n_pad).
    tm = _pick_tile(tm, n_pad)
    if n_pad // tm < 2 and n_pad >= 256:
        # Prefer >=2 row tiles so the "parallel" row axis feeds both v7x cores.
        tm = _pick_tile(n_pad // 2, n_pad)
    tk = _pick_tile(tk, n_pad)

    # 1) support, emitted already in the MXU input dtype, lane-dense.
    support = _compute_support(
        feat_p, w_t_pad, active=active, out_dtype=compute_dtype,
        tm=_pick_tile(512, n_pad),
    )

    # 2) output = adj @ support.
    mxu_dtype = None if compute_dtype == jnp.dtype(jnp.float32) else compute_dtype
    sup_itemsize = compute_dtype.itemsize
    sup_resident = n_pad * f_pad * sup_itemsize <= support_resident_bytes

    if sup_resident:
        # Constant block index: fetched once per core, no per-row-tile re-fetch.
        sup_spec = pl.BlockSpec((n_pad, f_pad), lambda i, k: (0, 0))
        sup_bytes = n_pad * f_pad * sup_itemsize
    else:
        sup_spec = pl.BlockSpec((tk, f_pad), lambda i, k: (k, 0))
        sup_bytes = (n_pad // tm) * n_pad * f_pad * sup_itemsize

    bytes_accessed = (
        n_pad * n_pad * 4          # adj read once, f32
        + sup_bytes                # support
        + n_pad * f_pad * 4        # f32 output
    )

    out_p = pl.pallas_call(
        functools.partial(_aggregate_kernel, tk=tk, mxu_dtype=mxu_dtype,
                          sup_resident=sup_resident),
        out_shape=jax.ShapeDtypeStruct((n_pad, f_pad), jnp.float32),
        grid_spec=pltpu.PrefetchScalarGridSpec(
            num_scalar_prefetch=0,
            grid=(n_pad // tm, n_pad // tk),
            in_specs=[
                pl.BlockSpec((tm, tk), lambda i, k: (i, k)),   # adj tile (f32)
                sup_spec,                                      # support
            ],
            out_specs=pl.BlockSpec((tm, f_pad), lambda i, k: (i, 0)),
        ),
        compiler_params=pltpu.CompilerParams(
            dimension_semantics=("parallel", "arbitrary"),
        ),
        cost_estimate=pl.CostEstimate(
            flops=2 * n_pad * n_pad * f_pad,
            transcendentals=0,
            bytes_accessed=bytes_accessed,
        ),
    )(adj_p, support)

    out = out_p[:n, :f_out]
    if out.dtype != out_dtype:
        out = out.astype(out_dtype)
    return out


# --------------------------------------------------------------------------
# Pure-JAX reference (mirrors the PyTorch module).
# --------------------------------------------------------------------------
def gnn_layer_ref(features, adj, weight, *, active=False):
    support = features @ weight.T
    if active:
        support = jnp.tanh(support)
    return adj @ support


if __name__ == "__main__":
    # Small shapes consistent with the module's forward.
    N, IN_FEATURES, OUT_FEATURES = 128, 64, 32

    key = jax.random.PRNGKey(0)
    k_feat, k_adj, k_w = jax.random.split(key, 3)

    features = jax.random.normal(k_feat, (N, IN_FEATURES), dtype=jnp.float32)
    adj = jax.random.uniform(k_adj, (N, N), dtype=jnp.float32)

    # Deterministic xavier_uniform_-style init for weight [out, in].
    bound = (6.0 / (IN_FEATURES + OUT_FEATURES)) ** 0.5
    weight = jax.random.uniform(
        k_w, (OUT_FEATURES, IN_FEATURES), dtype=jnp.float32,
        minval=-bound, maxval=bound,
    )

    ok = True
    for active in (False, True):
        ref = gnn_layer_ref(features, adj, weight, active=active)

        # Default (f32-numerics) path.
        out_f32 = jax.block_until_ready(
            gnn_layer(features, adj, weight, active=active))
        ok &= bool(jnp.allclose(out_f32, ref, atol=5e-2, rtol=1e-2))

        # Opt-in fast path (bf16 MXU inputs, f32 accumulation).
        out_bf16 = jax.block_until_ready(
            gnn_layer(features, adj, weight, active=active,
                      compute_dtype=jnp.bfloat16))
        ok &= bool(jnp.allclose(out_bf16, ref, atol=3e-1, rtol=3e-2))

    print("KERNEL_OK" if ok else "KERNEL_MISMATCH")
</pallas_src>

<mosaic_0001>
module attributes {stable_mosaic.version = 11 : i64} {
  func.func @_support_kernel(%arg0: i32, %arg1: memref<128x128xf32, #tpu.memory_space<vmem>>, %arg2: memref<128x128xf32, #tpu.memory_space<vmem>>, %arg3: memref<128x128xf32, #tpu.memory_space<vmem>>) attributes {dimension_semantics = [#tpu.dimension_semantics<parallel>], iteration_bounds = array<i64: 1>, scalar_prefetch = 0 : i64, scratch_operands = 0 : i64, tpu.core_type = #tpu.core_type<tc>, window_params = [{transform_indices = @transform_0, window_bounds = array<i64: 128, 128>}, {pipeline_mode = #tpu.pipeline_mode<synchronous>, transform_indices = @transform_1, window_bounds = array<i64: 128, 128>}, {transform_indices = @transform_2, window_bounds = array<i64: 128, 128>}]} {
    %c0 = arith.constant 0 : index
    %c0_0 = arith.constant 0 : index
    %0 = vector.load %arg1[%c0, %c0_0] : memref<128x128xf32, #tpu.memory_space<vmem>>, vector<128x128xf32>
    %c0_1 = arith.constant 0 : index
    %c0_2 = arith.constant 0 : index
    %1 = vector.load %arg2[%c0_1, %c0_2] : memref<128x128xf32, #tpu.memory_space<vmem>>, vector<128x128xf32>
    %cst = arith.constant dense<0.000000e+00> : vector<128x128xf32>
    %2 = tpu.matmul %0, %1, %cst {dimension_numbers = #tpu.dot_dimension_numbers<[1], [0], [0], [1], [0, 0, 1, 1], [], []>} : vector<128x128xf32>, vector<128x128xf32>, vector<128x128xf32> -> vector<128x128xf32>
    %c0_3 = arith.constant 0 : index
    %c0_4 = arith.constant 0 : index
    %3 = vector.load %arg3[%c0_3, %c0_4] : memref<128x128xf32, #tpu.memory_space<vmem>>, vector<128x128xf32>
    tpu.vector_store %arg3[%c0_3, %c0_4], %2 {strides = array<i32>} : memref<128x128xf32, #tpu.memory_space<vmem>>, vector<128x128xf32>,
    return
  }
  func.func @transform_0(%arg0: i32) -> (i32, i32) {
    %c0_i32 = arith.constant 0 : i32
    %c0_i32_0 = arith.constant 0 : i32
    return %arg0, %c0_i32 : i32, i32
  }
  func.func @transform_1(%arg0: i32) -> (i32, i32) {
    %c0_i32 = arith.constant 0 : i32
    %c0_i32_0 = arith.constant 0 : i32
    %c0_i32_1 = arith.constant 0 : i32
    return %c0_i32, %c0_i32_0 : i32, i32
  }
  func.func @transform_2(%arg0: i32) -> (i32, i32) {
    %c0_i32 = arith.constant 0 : i32
    %c0_i32_0 = arith.constant 0 : i32
    return %arg0, %c0_i32 : i32, i32
  }
}

</mosaic_0001>

<llo_original>
// kernel: tpu_custom_call.1
$region0: #{tpu_custom_call.1}
  #allocation0 [shape = 'u32[]', space=smem, size = 0x4, offset = 0x4, fixed_abs, tag = 'smem constant byte address 0x4 - core index']
  #allocation1 [shape = 'u32[72,128]{1,0:T(1,128)}', space=vmem, size = 0x9000, scoped, tag = 'internal scratch']
  %s0 = inlined_call_operand.hbm [shape: f32[128,128], index: 0, kind: input, shape index: {}]
  %s1 = inlined_call_operand.hbm [shape: f32[128,128], index: 1, kind: input, shape index: {}]
  %s2 = inlined_call_operand.hbm [shape: f32[128,128], index: 2, kind: output, shape index: {}]
  %s3 = sld [smem:[#allocation0]]
  $region26: #{tpu_custom_call.1} parent=0
    _
  %s5 = ssub.s32 1, %s3
  %s6 = scalar_select 0, %s5, %s3
  $region1: #{tpu_custom_call.1} parent=0
    #allocation2 [shape = 'u8[65536]{0}', space=vmem, size = 0x10000, scoped, tag = 'input window, operand 0, single buffered']
    #allocation3 [shape = 's32[1]{0}', space=sflag, size = 0x4, scoped, tag = 'scoped memory for tpu_custom_call.1']
    #allocation4 [shape = 's32[1]{0}', space=sflag, size = 0x4, scoped, tag = 'scoped memory for tpu_custom_call.1']
    #allocation5 [shape = 'u8[65536]{0}', space=vmem, size = 0x10000, scoped, tag = 'input window, operand 1, single buffered']
    #allocation6 [shape = 's32[1]{0}', space=sflag, size = 0x4, scoped, tag = 'scoped memory for tpu_custom_call.1']
    #allocation7 [shape = 'u8[65536]{0}', space=vmem, size = 0x10000, scoped, tag = 'output window, operand 0, single buffered']
    %7 = vsyncpa [#allocation3], 0
    %8 = vsyncpa [#allocation6], 0
    %9 = vsyncpa [#allocation4], 0
    // Predicated region
    $region2: #{tpu_custom_call.1} parent=1 // pred_check
      _
    $region3: #{tpu_custom_call.1} parent=1 // pred_check_branch
      %11 = sbr.rel (0) target = $region5
    $region4: #{tpu_custom_call.1} parent=1 // pred_region
      %13 = vsyncadd [#allocation3], 0
      %s14 = sshll.u32 %s0, 4
      %s15 = int_to_ptr.hbm [resolvable:$true] %s14
      %s16 = sshll.u32 [#allocation2], 4
      %s17 = int_to_ptr.vmem [resolvable:$true] %s16
      %22 = dma.hbm_to_vmem [thread:$0]  %s15, 2048, %s17, [#allocation3], 128, 128, 8
    $region5: #{tpu_custom_call.1} parent=1 // pred_fallthru
      _
    // Predicated region
    $region6: #{tpu_custom_call.1} parent=1 // pred_check
      _
    $region7: #{tpu_custom_call.1} parent=1 // pred_check_branch
      %24 = sbr.rel (0) target = $region9
    $region8: #{tpu_custom_call.1} parent=1 // pred_region
      %26 = vsyncadd [#allocation6], 0
      %s27 = sshll.u32 %s1, 4
      %s28 = int_to_ptr.hbm [resolvable:$true] %s27
      %s29 = sshll.u32 [#allocation5], 4
      %s30 = int_to_ptr.vmem [resolvable:$true] %s29
      %35 = dma.hbm_to_vmem [thread:$0]  %s28, 2048, %s30, [#allocation6], 128, 128, 8
    $region9: #{tpu_custom_call.1} parent=1 // pred_fallthru
      _
    // Predicated region
    $region10: #{tpu_custom_call.1} parent=1 // pred_check
      _
    $region11: #{tpu_custom_call.1} parent=1 // pred_check_branch
      %37 = sbr.rel (0) target = $region13
    $region12: #{tpu_custom_call.1} parent=1 // pred_region
      %39 = dma.done [#allocation3], 2048
    $region13: #{tpu_custom_call.1} parent=1 // pred_fallthru
      _
    // Predicated region
    $region14: #{tpu_custom_call.1} parent=1 // pred_check
      _
    $region15: #{tpu_custom_call.1} parent=1 // pred_check_branch
      %41 = sbr.rel (0) target = $region17
    $region16: #{tpu_custom_call.1} parent=1 // pred_region
      %43 = dma.done [#allocation6], 2048
    $region17: #{tpu_custom_call.1} parent=1 // pred_fallthru
      _
    %v44 = vld [vmem:[#allocation2] sm:$0xff]
    %v45 = vld [vmem:[#allocation2 + $0x8] sm:$0xff]
    %v46 = vld [vmem:[#allocation2 + $0x10] sm:$0xff]
    %v47 = vld [vmem:[#allocation2 + $0x18] sm:$0xff]
    %v48 = vld [vmem:[#allocation2 + $0x20] sm:$0xff]
    %v49 = vld [vmem:[#allocation2 + $0x28] sm:$0xff]
    %v50 = vld [vmem:[#allocation2 + $0x30] sm:$0xff]
    %v51 = vld [vmem:[#allocation2 + $0x38] sm:$0xff]
    %v52 = vld [vmem:[#allocation2 + $0x40] sm:$0xff]
    %v53 = vld [vmem:[#allocation2 + $0x48] sm:$0xff]
    %v54 = vld [vmem:[#allocation2 + $0x50] sm:$0xff]
    %v55 = vld [vmem:[#allocation2 + $0x58] sm:$0xff]
    %v56 = vld [vmem:[#allocation2 + $0x60] sm:$0xff]
    %v57 = vld [vmem:[#allocation2 + $0x68] sm:$0xff]
    %v58 = vld [vmem:[#allocation2 + $0x70] sm:$0xff]
    %v59 = vld [vmem:[#allocation2 + $0x78] sm:$0xff]
    %v60 = vld [vmem:[#allocation5] sm:$0xff]
    %v61 = vld [vmem:[#allocation5 + $0x8] sm:$0xff]
    %v62 = vld [vmem:[#allocation5 + $0x10] sm:$0xff]
    %v63 = vld [vmem:[#allocation5 + $0x18] sm:$0xff]
    %v64 = vld [vmem:[#allocation5 + $0x20] sm:$0xff]
    %v65 = vld [vmem:[#allocation5 + $0x28] sm:$0xff]
    %v66 = vld [vmem:[#allocation5 + $0x30] sm:$0xff]
    %v67 = vld [vmem:[#allocation5 + $0x38] sm:$0xff]
    %v68 = vld [vmem:[#allocation5 + $0x40] sm:$0xff]
    %v69 = vld [vmem:[#allocation5 + $0x48] sm:$0xff]
    %v70 = vld [vmem:[#allocation5 + $0x50] sm:$0xff]
    %v71 = vld [vmem:[#allocation5 + $0x58] sm:$0xff]
    %v72 = vld [vmem:[#allocation5 + $0x60] sm:$0xff]
    %v73 = vld [vmem:[#allocation5 + $0x68] sm:$0xff]
    %v74 = vld [vmem:[#allocation5 + $0x70] sm:$0xff]
    %v75 = vld [vmem:[#allocation5 + $0x78] sm:$0xff]
    %76 = vmatpush.msra.mxu0 %v75
    %77 = vmatpush.msra.mxu0 %v74
    %78 = vmatpush.msra.mxu0 %v73
    %79 = vmatpush.msra.mxu0 %v72
    %80 = vmatpush.msra.mxu0 %v71
    %81 = vmatpush.msra.mxu0 %v70
    %82 = vmatpush.msra.mxu0 %v69
    %83 = vmatpush.msra.mxu0 %v68
    %84 = vmatpush.msra.mxu0 %v67
    %85 = vmatpush.msra.mxu0 %v66
    %86 = vmatpush.msra.mxu0 %v65
    %87 = vmatpush.msra.mxu0 %v64
    %88 = vmatpush.msra.mxu0 %v63
    %89 = vmatpush.msra.mxu0 %v62
    %90 = vmatpush.msra.mxu0 %v61
    %91 = vmatpush.msra.mxu0 %v60
    %92 = vmatmul.f32.gmra.mxu0 %v44
    %v93 = vpop.f32.mrf.mxu0
    %v94 = vadd.f32 0.0, %v93
    %95 = vmatmul.f32.gmra.mxu0 %v45
    %v96 = vpop.f32.mrf.mxu0
    %v97 = vadd.f32 0.0, %v96
    %98 = vmatmul.f32.gmra.mxu0 %v46
    %v99 = vpop.f32.mrf.mxu0
    %v100 = vadd.f32 0.0, %v99
    %101 = vmatmul.f32.gmra.mxu0 %v47
    %v102 = vpop.f32.mrf.mxu0
    %v103 = vadd.f32 0.0, %v102
    %104 = vmatmul.f32.gmra.mxu0 %v48
    %v105 = vpop.f32.mrf.mxu0
    %v106 = vadd.f32 0.0, %v105
    %107 = vmatmul.f32.gmra.mxu0 %v49
    %v108 = vpop.f32.mrf.mxu0
    %v109 = vadd.f32 0.0, %v108
    %110 = vmatmul.f32.gmra.mxu0 %v50
    %v111 = vpop.f32.mrf.mxu0
    %v112 = vadd.f32 0.0, %v111
    %113 = vmatmul.f32.gmra.mxu0 %v51
    %v114 = vpop.f32.mrf.mxu0
    %v115 = vadd.f32 0.0, %v114
    %116 = vmatmul.f32.gmra.mxu0 %v52
    %v117 = vpop.f32.mrf.mxu0
    %v118 = vadd.f32 0.0, %v117
    %119 = vmatmul.f32.gmra.mxu0 %v53
    %v120 = vpop.f32.mrf.mxu0
    %v121 = vadd.f32 0.0, %v120
    %122 = vmatmul.f32.gmra.mxu0 %v54
    %v123 = vpop.f32.mrf.mxu0
    %v124 = vadd.f32 0.0, %v123
    %125 = vmatmul.f32.gmra.mxu0 %v55
    %v126 = vpop.f32.mrf.mxu0
    %v127 = vadd.f32 0.0, %v126
    %128 = vmatmul.f32.gmra.mxu0 %v56
    %v129 = vpop.f32.mrf.mxu0
    %v130 = vadd.f32 0.0, %v129
    %131 = vmatmul.f32.gmra.mxu0 %v57
    %v132 = vpop.f32.mrf.mxu0
    %v133 = vadd.f32 0.0, %v132
    %134 = vmatmul.f32.gmra.mxu0 %v58
    %v135 = vpop.f32.mrf.mxu0
    %v136 = vadd.f32 0.0, %v135
    %137 = vmatmul.f32.gmra.mxu0 %v59
    %v138 = vpop.f32.mrf.mxu0
    %v139 = vadd.f32 0.0, %v138
    %140 = vdwg.mxu0
    %141 = vst [vmem:[#allocation7] sm:$0xff] %v94
    %142 = vst [vmem:[#allocation7 + $0x8] sm:$0xff] %v97
    %143 = vst [vmem:[#allocation7 + $0x10] sm:$0xff] %v100
    %144 = vst [vmem:[#allocation7 + $0x18] sm:$0xff] %v103
    %145 = vst [vmem:[#allocation7 + $0x20] sm:$0xff] %v106
    %146 = vst [vmem:[#allocation7 + $0x28] sm:$0xff] %v109
    %147 = vst [vmem:[#allocation7 + $0x30] sm:$0xff] %v112
    %148 = vst [vmem:[#allocation7 + $0x38] sm:$0xff] %v115
    %149 = vst [vmem:[#allocation7 + $0x40] sm:$0xff] %v118
    %150 = vst [vmem:[#allocation7 + $0x48] sm:$0xff] %v121
    %151 = vst [vmem:[#allocation7 + $0x50] sm:$0xff] %v124
    %152 = vst [vmem:[#allocation7 + $0x58] sm:$0xff] %v127
    %153 = vst [vmem:[#allocation7 + $0x60] sm:$0xff] %v130
    %154 = vst [vmem:[#allocation7 + $0x68] sm:$0xff] %v133
    %155 = vst [vmem:[#allocation7 + $0x70] sm:$0xff] %v136
    %156 = vst [vmem:[#allocation7 + $0x78] sm:$0xff] %v139
    // Predicated region
    $region18: #{tpu_custom_call.1} parent=1 // pred_check
      _
    $region19: #{tpu_custom_call.1} parent=1 // pred_check_branch
      %158 = sbr.rel (0) target = $region21
    $region20: #{tpu_custom_call.1} parent=1 // pred_region
      %160 = vsyncadd [#allocation4], 0
      %s161 = sshll.u32 [#allocation7], 4
      %s162 = int_to_ptr.vmem [resolvable:$true] %s161
      %s163 = sshll.u32 %s2, 4
      %s164 = int_to_ptr.hbm [resolvable:$true] %s163
      %169 = dma.vmem_to_hbm [thread:$0]  %s162, 2048, %s164, [#allocation4], 128, 128, 8
    $region21: #{tpu_custom_call.1} parent=1 // pred_fallthru
      _
    // Predicated region
    $region22: #{tpu_custom_call.1} parent=1 // pred_check
      _
    $region23: #{tpu_custom_call.1} parent=1 // pred_check_branch
      %171 = sbr.rel (0) target = $region25
    $region24: #{tpu_custom_call.1} parent=1 // pred_region
      %173 = dma.done [#allocation4], 2048
    $region25: #{tpu_custom_call.1} parent=1 // pred_fallthru
      _
    %174 = vsyncpa [#allocation3], 1
    %175 = vsyncpa [#allocation6], 1
    %176 = vsyncpa [#allocation4], 1

</llo_original>
